<compile_context>
chip_gen: v5e
topology: v5e:2x2
jax: 0.10.0
libtpu: 0.0.40
codegen_flags: <defaults>
</compile_context>

<pallas_src>
import math

import numpy as np
import jax
import jax.numpy as jnp
from jax.experimental import pallas as pl
from jax.experimental.pallas import tpu as pltpu


def _lru_kernel(x_ref, mask_ref, w_in_ref, b_in_ref, gamma_ref,
                sel_ref, lam_re_ref, lam_im_ref,
                w_out_ref, b_out_ref, ln_w_ref, ln_b_ref, o_ref):
    n_levels = sel_ref.shape[0]

    x = x_ref[0]                                    # (R, E) float32
    mask_row = mask_ref[0].astype(jnp.bfloat16)     # (1, R)  0/1

    # ---- in_proj on the MXU (bf16 in, f32 accumulate) + gamma scale ----
    h_re = (jnp.dot(x.astype(jnp.bfloat16), w_in_ref[...],
                    preferred_element_type=jnp.float32)
            + b_in_ref[...]) * gamma_ref[...]       # (R, H) float32
    h_im = None                                     # imaginary plane starts at 0

    # ---- blocked-doubling LRU scan, one full-tile update per level ----
    for i in range(n_levels):
        last = (i + 1 == n_levels)
        # 0/1 selector with the boundary mask folded into its columns
        sel_m = sel_ref[i] * mask_row               # (R, R) bf16
        lam_re = lam_re_ref[i]                      # (R, H) f32, zero on first-half rows
        lam_im = lam_im_ref[i]
        # masked boundary carry, broadcast to every row of its block (MXU)
        c_re = jnp.dot(sel_m, h_re.astype(jnp.bfloat16),
                       preferred_element_type=jnp.float32)
        if h_im is None:                            # level 1: carry is purely real
            new_re = h_re + lam_re * c_re
            new_im = None if last else lam_im * c_re
        else:
            c_im = jnp.dot(sel_m, h_im.astype(jnp.bfloat16),
                           preferred_element_type=jnp.float32)
            new_re = h_re + lam_re * c_re - lam_im * c_im
            new_im = None if last else h_im + lam_re * c_im + lam_im * c_re
        h_re, h_im = new_re, new_im                 # imag plane unused after last level

    # ---- out_proj (.real of h with real weights) + residual + LayerNorm ----
    out = jnp.dot(h_re.astype(jnp.bfloat16), w_out_ref[...],
                  preferred_element_type=jnp.float32) + b_out_ref[...]
    # dropout: inference mode (identity)
    y = out + x
    mean = jnp.mean(y, axis=-1, keepdims=True)
    var = jnp.mean((y - mean) ** 2, axis=-1, keepdims=True)
    y = (y - mean) * jax.lax.rsqrt(var + 1e-5)
    # NOTE: for E >= 128 this store is already lane-dense; at toy E=64 it is a
    # small masked store and not worth repacking.
    o_ref[0] = y * ln_w_ref[...] + ln_b_ref[...]


def _pick_tb(B, L):
    """Batch rows folded into one grid step: fill the MXU M dim (>=128) when
    possible, otherwise keep >=2 grid steps so both v7x TensorCores get work."""
    divs = [d for d in range(1, B + 1) if B % d == 0]
    for d in divs:
        if d * L >= 128:
            return d
    for d in reversed(divs):
        if B // d >= 2:
            return d
    return divs[-1]


def _scan_tables(diag_lambda, L, R):
    """Per-level selector + lambda-power tables for the blocked-doubling scan."""
    n_levels = int(math.log2(L))
    lamb = np.asarray(diag_lambda, dtype=np.complex64)[None, :]   # (1, H)
    for _ in range(2, n_levels + 1):                              # same doubling as torch
        lamb = np.concatenate([lamb, lamb * lamb[-1:]], axis=0)   # -> (L//2, H)
    H = lamb.shape[1]

    sel = np.zeros((n_levels, R, R), np.float32)
    lam_re = np.zeros((n_levels, R, H), np.float32)
    lam_im = np.zeros((n_levels, R, H), np.float32)
    rows = np.arange(R)
    for idx in range(n_levels):
        l = 2 ** (idx + 1)
        half = l // 2
        second = (rows % l) >= half                   # rows updated at this level
        boundary = (rows // l) * l + half - 1         # carry row of each block
        sel[idx, rows[second], boundary[second]] = 1.0
        p = (rows % l) - half                         # lambda power - 1
        lam_re[idx, second, :] = np.real(lamb[p[second]])
        lam_im[idx, second, :] = np.imag(lamb[p[second]])
    return (jnp.asarray(sel, jnp.bfloat16),
            jnp.asarray(lam_re, jnp.float32),
            jnp.asarray(lam_im, jnp.float32))


def lru_layer(x, mask, params):
    B, L, E = x.shape
    H = 2 * E
    assert L >= 2 and (L & (L - 1)) == 0, "seq length must be a power of 2"

    TB = _pick_tb(B, L)
    G, R = B // TB, TB * L
    n_levels = int(math.log2(L))

    sel, lam_re, lam_im = _scan_tables(params["diag_lambda"], L, R)

    args = (
        x.astype(jnp.float32).reshape(G, R, E),
        mask.astype(jnp.float32).reshape(G, 1, R),
        params["w_in"].astype(jnp.bfloat16),
        params["b_in"].reshape(1, H).astype(jnp.float32),
        params["gamma"].reshape(1, H).astype(jnp.float32),
        sel, lam_re, lam_im,
        params["w_out"].astype(jnp.bfloat16),
        params["b_out"].reshape(1, E).astype(jnp.float32),
        params["ln_w"].reshape(1, E).astype(jnp.float32),
        params["ln_b"].reshape(1, E).astype(jnp.float32),
    )

    def full(shape):
        return pl.BlockSpec(shape, lambda g, _n=len(shape): (0,) * _n)

    in_specs = [
        pl.BlockSpec((1, R, E), lambda g: (g, 0, 0)),    # x
        pl.BlockSpec((1, 1, R), lambda g: (g, 0, 0)),    # mask
        full((E, H)), full((1, H)), full((1, H)),        # w_in, b_in, gamma
        full((n_levels, R, R)),                          # carry selector
        full((n_levels, R, H)), full((n_levels, R, H)),  # lambda powers re / im
        full((H, E)), full((1, E)),                      # w_out, b_out
        full((1, E)), full((1, E)),                      # ln_w, ln_b
    ]

    # Explicit VMEM budget (assume everything double-buffered), clamped to the
    # v7x 64 MiB physical capacity.
    def nbytes(a):
        return int(np.prod(a.shape)) * a.dtype.itemsize
    block_bytes = 2 * R * E * 4 + R * 4                  # x block + out block + mask
    const_bytes = sum(nbytes(a) for a in args[2:])
    est = 2 * (block_bytes + const_bytes)
    vmem_limit = int(min(64 * 2**20, max(16 * 2**20, 4 * est)))

    out = pl.pallas_call(
        _lru_kernel,
        out_shape=jax.ShapeDtypeStruct((G, R, E), jnp.float32),
        grid_spec=pltpu.PrefetchScalarGridSpec(
            num_scalar_prefetch=0,
            grid=(G,),
            in_specs=in_specs,
            out_specs=pl.BlockSpec((1, R, E), lambda g: (g, 0, 0)),
        ),
        compiler_params=pltpu.CompilerParams(
            dimension_semantics=("parallel",),
            vmem_limit_bytes=vmem_limit,
        ),
    )(*args)
    return out.reshape(B, L, E)


def init_params(key, d_model, r_min=0.8, r_max=0.99):
    E, H = d_model, 2 * d_model
    k = jax.random.split(key, 6)
    u1 = jax.random.uniform(k[0], (H,), jnp.float32)
    u2 = jax.random.uniform(k[1], (H,), jnp.float32)
    nu_log = jnp.log(-0.5 * jnp.log(u1 * (r_max ** 2 - r_min ** 2) + r_min ** 2))
    theta_log = jnp.log(u2 * 2.0 * jnp.pi)
    nu = jnp.exp(nu_log)
    theta = jnp.exp(theta_log)
    diag_lambda = jnp.exp(-nu + 1j * theta).astype(jnp.complex64)
    gamma = jnp.sqrt(1.0 - jnp.abs(diag_lambda) ** 2).astype(jnp.float32)

    bi = 1.0 / math.sqrt(E)
    w_in = jax.random.uniform(k[2], (E, H), jnp.float32, -bi, bi)   # torch weight.T
    b_in = jax.random.uniform(k[3], (H,), jnp.float32, -bi, bi)
    bo = 1.0 / math.sqrt(H)
    w_out = jax.random.uniform(k[4], (H, E), jnp.float32, -bo, bo)  # torch weight.T
    b_out = jax.random.uniform(k[5], (E,), jnp.float32, -bo, bo)
    return dict(diag_lambda=diag_lambda, gamma=gamma,
                w_in=w_in, b_in=b_in, w_out=w_out, b_out=b_out,
                ln_w=jnp.ones((E,), jnp.float32), ln_b=jnp.zeros((E,), jnp.float32))


def lru_layer_ref(x, mask, params):
    """Pure-JAX (complex64, f32 HIGHEST) replica of the PyTorch forward."""
    B, L, E = x.shape
    H = 2 * E
    h = (jnp.einsum("ble,eh->blh", x, params["w_in"],
                    precision=jax.lax.Precision.HIGHEST) + params["b_in"]) * params["gamma"]
    h = h.astype(jnp.complex64)
    lamb = params["diag_lambda"][None, :]
    log2_L = int(math.ceil(math.log2(L)))
    for i in range(1, log2_L + 1):
        l = 2 ** i
        h = h.reshape(B * L // l, l, H)
        m_ = mask.reshape(B * L // l, l)
        h1, h2 = h[:, : l // 2], h[:, l // 2:]
        if i > 1:
            lamb = jnp.concatenate([lamb, lamb * lamb[-1:]], axis=0)
        h2 = h2 + lamb * h1[:, -1:] * m_[:, l // 2 - 1: l // 2][..., None]
        h = jnp.concatenate([h1, h2], axis=1)
    h = h.reshape(B, L, H)
    out = jnp.einsum("blh,he->ble", jnp.real(h), params["w_out"],
                     precision=jax.lax.Precision.HIGHEST) + params["b_out"]
    y = out + x
    mean = jnp.mean(y, -1, keepdims=True)
    var = jnp.mean((y - mean) ** 2, -1, keepdims=True)
    return (y - mean) / jnp.sqrt(var + 1e-5) * params["ln_w"] + params["ln_b"]


if __name__ == "__main__":
    key = jax.random.PRNGKey(0)
    kp, kx, km = jax.random.split(key, 3)
    d_model, B, L = 64, 2, 8

    params = init_params(kp, d_model)
    x = jax.random.normal(kx, (B, L, d_model), jnp.float32)
    mask = (jax.random.uniform(km, (B, L)) > 0.25).astype(jnp.float32)

    out = jax.block_until_ready(lru_layer(x, mask, params))
    ref = lru_layer_ref(x, mask, params)

    assert out.shape == (B, L, d_model)
    err = float(jnp.max(jnp.abs(out - ref)))
    # bf16 MXU inputs (f32 accumulation) -> slightly looser tolerance than pure f32.
    assert jnp.allclose(out, ref, atol=5e-2, rtol=5e-2), f"max abs err = {err}"
    # TODO(synk): nn.Dropout is identity here (inference mode); training-mode
    # stochastic masking would need pltpu.prng_* inside the kernel.
    print("KERNEL_OK")
</pallas_src>

<mosaic_0001>
module attributes {stable_mosaic.version = 11 : i64} {
  func.func @_lru_kernel(%arg0: i32, %arg1: memref<1x8x64xf32, #tpu.memory_space<vmem>>, %arg2: memref<1x1x8xf32, #tpu.memory_space<vmem>>, %arg3: memref<64x128xbf16, #tpu.memory_space<vmem>>, %arg4: memref<1x128xf32, #tpu.memory_space<vmem>>, %arg5: memref<1x128xf32, #tpu.memory_space<vmem>>, %arg6: memref<3x8x8xbf16, #tpu.memory_space<vmem>>, %arg7: memref<3x8x128xf32, #tpu.memory_space<vmem>>, %arg8: memref<3x8x128xf32, #tpu.memory_space<vmem>>, %arg9: memref<128x64xbf16, #tpu.memory_space<vmem>>, %arg10: memref<1x64xf32, #tpu.memory_space<vmem>>, %arg11: memref<1x64xf32, #tpu.memory_space<vmem>>, %arg12: memref<1x64xf32, #tpu.memory_space<vmem>>, %arg13: memref<1x8x64xf32, #tpu.memory_space<vmem>>) attributes {dimension_semantics = [#tpu.dimension_semantics<parallel>], iteration_bounds = array<i64: 2>, scalar_prefetch = 0 : i64, scratch_operands = 0 : i64, tpu.core_type = #tpu.core_type<tc>, window_params = [{transform_indices = @transform_0, window_bounds = array<i64: 1, 8, 64>}, {transform_indices = @transform_1, window_bounds = array<i64: 1, 1, 8>}, {pipeline_mode = #tpu.pipeline_mode<synchronous>, transform_indices = @transform_2, window_bounds = array<i64: 64, 128>}, {pipeline_mode = #tpu.pipeline_mode<synchronous>, transform_indices = @transform_3, window_bounds = array<i64: 1, 128>}, {pipeline_mode = #tpu.pipeline_mode<synchronous>, transform_indices = @transform_4, window_bounds = array<i64: 1, 128>}, {pipeline_mode = #tpu.pipeline_mode<synchronous>, transform_indices = @transform_5, window_bounds = array<i64: 3, 8, 8>}, {pipeline_mode = #tpu.pipeline_mode<synchronous>, transform_indices = @transform_6, window_bounds = array<i64: 3, 8, 128>}, {pipeline_mode = #tpu.pipeline_mode<synchronous>, transform_indices = @transform_7, window_bounds = array<i64: 3, 8, 128>}, {pipeline_mode = #tpu.pipeline_mode<synchronous>, transform_indices = @transform_8, window_bounds = array<i64: 128, 64>}, {pipeline_mode = #tpu.pipeline_mode<synchronous>, transform_indices = @transform_9, window_bounds = array<i64: 1, 64>}, {pipeline_mode = #tpu.pipeline_mode<synchronous>, transform_indices = @transform_10, window_bounds = array<i64: 1, 64>}, {pipeline_mode = #tpu.pipeline_mode<synchronous>, transform_indices = @transform_11, window_bounds = array<i64: 1, 64>}, {transform_indices = @transform_12, window_bounds = array<i64: 1, 8, 64>}]} {
    %c0 = arith.constant 0 : index
    %c0_0 = arith.constant 0 : index
    %c0_1 = arith.constant 0 : index
    %0 = vector.load %arg1[%c0, %c0_0, %c0_1] : memref<1x8x64xf32, #tpu.memory_space<vmem>>, vector<1x8x64xf32>
    %1 = vector.shape_cast %0 : vector<1x8x64xf32> to vector<8x64xf32>
    %c0_2 = arith.constant 0 : index
    %c0_3 = arith.constant 0 : index
    %c0_4 = arith.constant 0 : index
    %2 = vector.load %arg2[%c0_2, %c0_3, %c0_4] : memref<1x1x8xf32, #tpu.memory_space<vmem>>, vector<1x1x8xf32>
    %3 = vector.shape_cast %2 : vector<1x1x8xf32> to vector<1x8xf32>
    %4 = arith.truncf %3 : vector<1x8xf32> to vector<1x8xbf16>
    %5 = arith.truncf %1 : vector<8x64xf32> to vector<8x64xbf16>
    %c0_5 = arith.constant 0 : index
    %c0_6 = arith.constant 0 : index
    %6 = vector.load %arg3[%c0_5, %c0_6] : memref<64x128xbf16, #tpu.memory_space<vmem>>, vector<64x128xbf16>
    %cst = arith.constant dense<0.000000e+00> : vector<8x128xf32>
    %7 = tpu.matmul %5, %6, %cst {dimension_numbers = #tpu.dot_dimension_numbers<[1], [0], [0], [1], [0, 0, 1, 1], [], []>} : vector<8x64xbf16>, vector<64x128xbf16>, vector<8x128xf32> -> vector<8x128xf32>
    %c0_7 = arith.constant 0 : index
    %c0_8 = arith.constant 0 : index
    %8 = vector.load %arg4[%c0_7, %c0_8] : memref<1x128xf32, #tpu.memory_space<vmem>>, vector<1x128xf32>
    %9 = vector.broadcast %8 : vector<1x128xf32> to vector<8x128xf32>
    %10 = arith.addf %7, %9 : vector<8x128xf32>
    %c0_9 = arith.constant 0 : index
    %c0_10 = arith.constant 0 : index
    %11 = vector.load %arg5[%c0_9, %c0_10] : memref<1x128xf32, #tpu.memory_space<vmem>>, vector<1x128xf32>
    %12 = vector.broadcast %11 : vector<1x128xf32> to vector<8x128xf32>
    %13 = arith.mulf %10, %12 : vector<8x128xf32>
    %c0_11 = arith.constant 0 : index
    %c0_12 = arith.constant 0 : index
    %c0_13 = arith.constant 0 : index
    %14 = vector.load %arg6[%c0_11, %c0_12, %c0_13] : memref<3x8x8xbf16, #tpu.memory_space<vmem>>, vector<1x8x8xbf16>
    %15 = vector.shape_cast %14 : vector<1x8x8xbf16> to vector<8x8xbf16>
    %16 = vector.broadcast %4 : vector<1x8xbf16> to vector<8x8xbf16>
    %17 = arith.mulf %15, %16 : vector<8x8xbf16>
    %c0_14 = arith.constant 0 : index
    %c0_15 = arith.constant 0 : index
    %c0_16 = arith.constant 0 : index
    %18 = vector.load %arg7[%c0_14, %c0_15, %c0_16] : memref<3x8x128xf32, #tpu.memory_space<vmem>>, vector<1x8x128xf32>
    %19 = vector.shape_cast %18 : vector<1x8x128xf32> to vector<8x128xf32>
    %c0_17 = arith.constant 0 : index
    %c0_18 = arith.constant 0 : index
    %c0_19 = arith.constant 0 : index
    %20 = vector.load %arg8[%c0_17, %c0_18, %c0_19] : memref<3x8x128xf32, #tpu.memory_space<vmem>>, vector<1x8x128xf32>
    %21 = vector.shape_cast %20 : vector<1x8x128xf32> to vector<8x128xf32>
    %22 = arith.truncf %13 : vector<8x128xf32> to vector<8x128xbf16>
    %cst_20 = arith.constant dense<0.000000e+00> : vector<8x128xf32>
    %23 = tpu.matmul %17, %22, %cst_20 {dimension_numbers = #tpu.dot_dimension_numbers<[1], [0], [0], [1], [0, 0, 1, 1], [], []>} : vector<8x8xbf16>, vector<8x128xbf16>, vector<8x128xf32> -> vector<8x128xf32>
    %24 = arith.mulf %19, %23 : vector<8x128xf32>
    %25 = arith.addf %13, %24 : vector<8x128xf32>
    %26 = arith.mulf %21, %23 : vector<8x128xf32>
    %c1 = arith.constant 1 : index
    %c0_21 = arith.constant 0 : index
    %c0_22 = arith.constant 0 : index
    %27 = vector.load %arg6[%c1, %c0_21, %c0_22] : memref<3x8x8xbf16, #tpu.memory_space<vmem>>, vector<1x8x8xbf16>
    %28 = vector.shape_cast %27 : vector<1x8x8xbf16> to vector<8x8xbf16>
    %29 = vector.broadcast %4 : vector<1x8xbf16> to vector<8x8xbf16>
    %30 = arith.mulf %28, %29 : vector<8x8xbf16>
    %c1_23 = arith.constant 1 : index
    %c0_24 = arith.constant 0 : index
    %c0_25 = arith.constant 0 : index
    %31 = vector.load %arg7[%c1_23, %c0_24, %c0_25] : memref<3x8x128xf32, #tpu.memory_space<vmem>>, vector<1x8x128xf32>
    %32 = vector.shape_cast %31 : vector<1x8x128xf32> to vector<8x128xf32>
    %c1_26 = arith.constant 1 : index
    %c0_27 = arith.constant 0 : index
    %c0_28 = arith.constant 0 : index
    %33 = vector.load %arg8[%c1_26, %c0_27, %c0_28] : memref<3x8x128xf32, #tpu.memory_space<vmem>>, vector<1x8x128xf32>
    %34 = vector.shape_cast %33 : vector<1x8x128xf32> to vector<8x128xf32>
    %35 = arith.truncf %25 : vector<8x128xf32> to vector<8x128xbf16>
    %cst_29 = arith.constant dense<0.000000e+00> : vector<8x128xf32>
    %36 = tpu.matmul %30, %35, %cst_29 {dimension_numbers = #tpu.dot_dimension_numbers<[1], [0], [0], [1], [0, 0, 1, 1], [], []>} : vector<8x8xbf16>, vector<8x128xbf16>, vector<8x128xf32> -> vector<8x128xf32>
    %37 = arith.truncf %26 : vector<8x128xf32> to vector<8x128xbf16>
    %cst_30 = arith.constant dense<0.000000e+00> : vector<8x128xf32>
    %38 = tpu.matmul %30, %37, %cst_30 {dimension_numbers = #tpu.dot_dimension_numbers<[1], [0], [0], [1], [0, 0, 1, 1], [], []>} : vector<8x8xbf16>, vector<8x128xbf16>, vector<8x128xf32> -> vector<8x128xf32>
    %39 = arith.mulf %32, %36 : vector<8x128xf32>
    %40 = arith.addf %25, %39 : vector<8x128xf32>
    %41 = arith.mulf %34, %38 : vector<8x128xf32>
    %42 = arith.subf %40, %41 : vector<8x128xf32>
    %43 = arith.mulf %32, %38 : vector<8x128xf32>
    %44 = arith.addf %26, %43 : vector<8x128xf32>
    %45 = arith.mulf %34, %36 : vector<8x128xf32>
    %46 = arith.addf %44, %45 : vector<8x128xf32>
    %c2 = arith.constant 2 : index
    %c0_31 = arith.constant 0 : index
    %c0_32 = arith.constant 0 : index
    %47 = vector.load %arg6[%c2, %c0_31, %c0_32] : memref<3x8x8xbf16, #tpu.memory_space<vmem>>, vector<1x8x8xbf16>
    %48 = vector.shape_cast %47 : vector<1x8x8xbf16> to vector<8x8xbf16>
    %49 = vector.broadcast %4 : vector<1x8xbf16> to vector<8x8xbf16>
    %50 = arith.mulf %48, %49 : vector<8x8xbf16>
    %c2_33 = arith.constant 2 : index
    %c0_34 = arith.constant 0 : index
    %c0_35 = arith.constant 0 : index
    %51 = vector.load %arg7[%c2_33, %c0_34, %c0_35] : memref<3x8x128xf32, #tpu.memory_space<vmem>>, vector<1x8x128xf32>
    %52 = vector.shape_cast %51 : vector<1x8x128xf32> to vector<8x128xf32>
    %c2_36 = arith.constant 2 : index
    %c0_37 = arith.constant 0 : index
    %c0_38 = arith.constant 0 : index
    %53 = vector.load %arg8[%c2_36, %c0_37, %c0_38] : memref<3x8x128xf32, #tpu.memory_space<vmem>>, vector<1x8x128xf32>
    %54 = vector.shape_cast %53 : vector<1x8x128xf32> to vector<8x128xf32>
    %55 = arith.truncf %42 : vector<8x128xf32> to vector<8x128xbf16>
    %cst_39 = arith.constant dense<0.000000e+00> : vector<8x128xf32>
    %56 = tpu.matmul %50, %55, %cst_39 {dimension_numbers = #tpu.dot_dimension_numbers<[1], [0], [0], [1], [0, 0, 1, 1], [], []>} : vector<8x8xbf16>, vector<8x128xbf16>, vector<8x128xf32> -> vector<8x128xf32>
    %57 = arith.truncf %46 : vector<8x128xf32> to vector<8x128xbf16>
    %cst_40 = arith.constant dense<0.000000e+00> : vector<8x128xf32>
    %58 = tpu.matmul %50, %57, %cst_40 {dimension_numbers = #tpu.dot_dimension_numbers<[1], [0], [0], [1], [0, 0, 1, 1], [], []>} : vector<8x8xbf16>, vector<8x128xbf16>, vector<8x128xf32> -> vector<8x128xf32>
    %59 = arith.mulf %52, %56 : vector<8x128xf32>
    %60 = arith.addf %42, %59 : vector<8x128xf32>
    %61 = arith.mulf %54, %58 : vector<8x128xf32>
    %62 = arith.subf %60, %61 : vector<8x128xf32>
    %63 = arith.truncf %62 : vector<8x128xf32> to vector<8x128xbf16>
    %c0_41 = arith.constant 0 : index
    %c0_42 = arith.constant 0 : index
    %64 = vector.load %arg9[%c0_41, %c0_42] : memref<128x64xbf16, #tpu.memory_space<vmem>>, vector<128x64xbf16>
    %cst_43 = arith.constant dense<0.000000e+00> : vector<8x64xf32>
    %65 = tpu.matmul %63, %64, %cst_43 {dimension_numbers = #tpu.dot_dimension_numbers<[1], [0], [0], [1], [0, 0, 1, 1], [], []>} : vector<8x128xbf16>, vector<128x64xbf16>, vector<8x64xf32> -> vector<8x64xf32>
    %c0_44 = arith.constant 0 : index
    %c0_45 = arith.constant 0 : index
    %66 = vector.load %arg10[%c0_44, %c0_45] : memref<1x64xf32, #tpu.memory_space<vmem>>, vector<1x64xf32>
    %67 = vector.broadcast %66 : vector<1x64xf32> to vector<8x64xf32>
    %68 = arith.addf %65, %67 : vector<8x64xf32>
    %69 = arith.addf %68, %1 : vector<8x64xf32>
    %cst_46 = arith.constant dense<0.000000e+00> : vector<8xf32>
    %70 = vector.multi_reduction <add>, %69, %cst_46 [1] : vector<8x64xf32> to vector<8xf32>
    %71 = vector.shape_cast %70 : vector<8xf32> to vector<8x1xf32>
    %cst_47 = arith.constant 6.400000e+01 : f32
    %72 = vector.broadcast %cst_47 : f32 to vector<8x1xf32>
    %73 = arith.divf %71, %72 : vector<8x1xf32>
    %74 = vector.broadcast %73 : vector<8x1xf32> to vector<8x64xf32>
    %75 = arith.subf %69, %74 : vector<8x64xf32>
    %76 = arith.mulf %75, %75 : vector<8x64xf32>
    %cst_48 = arith.constant dense<0.000000e+00> : vector<8xf32>
    %77 = vector.multi_reduction <add>, %76, %cst_48 [1] : vector<8x64xf32> to vector<8xf32>
    %78 = vector.shape_cast %77 : vector<8xf32> to vector<8x1xf32>
    %cst_49 = arith.constant 6.400000e+01 : f32
    %79 = vector.broadcast %cst_49 : f32 to vector<8x1xf32>
    %80 = arith.divf %78, %79 : vector<8x1xf32>
    %81 = vector.broadcast %73 : vector<8x1xf32> to vector<8x64xf32>
    %82 = arith.subf %69, %81 : vector<8x64xf32>
    %cst_50 = arith.constant 9.99999974E-6 : f32
    %83 = vector.broadcast %cst_50 : f32 to vector<8x1xf32>
    %84 = arith.addf %80, %83 : vector<8x1xf32>
    %85 = math.rsqrt %84 : vector<8x1xf32>
    %86 = vector.broadcast %85 : vector<8x1xf32> to vector<8x64xf32>
    %87 = arith.mulf %82, %86 : vector<8x64xf32>
    %c0_51 = arith.constant 0 : index
    %c0_52 = arith.constant 0 : index
    %88 = vector.load %arg11[%c0_51, %c0_52] : memref<1x64xf32, #tpu.memory_space<vmem>>, vector<1x64xf32>
    %89 = vector.broadcast %88 : vector<1x64xf32> to vector<8x64xf32>
    %90 = arith.mulf %87, %89 : vector<8x64xf32>
    %c0_53 = arith.constant 0 : index
    %c0_54 = arith.constant 0 : index
    %91 = vector.load %arg12[%c0_53, %c0_54] : memref<1x64xf32, #tpu.memory_space<vmem>>, vector<1x64xf32>
    %92 = vector.broadcast %91 : vector<1x64xf32> to vector<8x64xf32>
    %93 = arith.addf %90, %92 : vector<8x64xf32>
    %c0_55 = arith.constant 0 : index
    %c0_56 = arith.constant 0 : index
    %c0_57 = arith.constant 0 : index
    %94 = vector.load %arg13[%c0_55, %c0_56, %c0_57] : memref<1x8x64xf32, #tpu.memory_space<vmem>>, vector<1x8x64xf32>
    %95 = vector.shape_cast %94 : vector<1x8x64xf32> to vector<8x64xf32>
    %96 = vector.shape_cast %93 : vector<8x64xf32> to vector<1x8x64xf32>
    tpu.vector_store %arg13[%c0_55, %c0_56, %c0_57], %96 {strides = array<i32>} : memref<1x8x64xf32, #tpu.memory_space<vmem>>, vector<1x8x64xf32>,
    return
  }
  func.func @transform_0(%arg0: i32) -> (i32, i32, i32) {
    %c0_i32 = arith.constant 0 : i32
    %c0_i32_0 = arith.constant 0 : i32
    %c0_i32_1 = arith.constant 0 : i32
    return %arg0, %c0_i32, %c0_i32_0 : i32, i32, i32
  }
  func.func @transform_1(%arg0: i32) -> (i32, i32, i32) {
    %c0_i32 = arith.constant 0 : i32
    %c0_i32_0 = arith.constant 0 : i32
    %c0_i32_1 = arith.constant 0 : i32
    return %arg0, %c0_i32, %c0_i32_0 : i32, i32, i32
  }
  func.func @transform_2(%arg0: i32) -> (i32, i32) {
    %c0_i32 = arith.constant 0 : i32
    %c0_i32_0 = arith.constant 0 : i32
    %c0_i32_1 = arith.constant 0 : i32
    return %c0_i32, %c0_i32_0 : i32, i32
  }
  func.func @transform_3(%arg0: i32) -> (i32, i32) {
    %c0_i32 = arith.constant 0 : i32
    %c0_i32_0 = arith.constant 0 : i32
    %c0_i32_1 = arith.constant 0 : i32
    return %c0_i32, %c0_i32_0 : i32, i32
  }
  func.func @transform_4(%arg0: i32) -> (i32, i32) {
    %c0_i32 = arith.constant 0 : i32
    %c0_i32_0 = arith.constant 0 : i32
    %c0_i32_1 = arith.constant 0 : i32
    return %c0_i32, %c0_i32_0 : i32, i32
  }
  func.func @transform_5(%arg0: i32) -> (i32, i32, i32) {
    %c0_i32 = arith.constant 0 : i32
    %c0_i32_0 = arith.constant 0 : i32
    %c0_i32_1 = arith.constant 0 : i32
    %c0_i32_2 = arith.constant 0 : i32
    return %c0_i32, %c0_i32_0, %c0_i32_1 : i32, i32, i32
  }
  func.func @transform_6(%arg0: i32) -> (i32, i32, i32) {
    %c0_i32 = arith.constant 0 : i32
    %c0_i32_0 = arith.constant 0 : i32
    %c0_i32_1 = arith.constant 0 : i32
    %c0_i32_2 = arith.constant 0 : i32
    return %c0_i32, %c0_i32_0, %c0_i32_1 : i32, i32, i32
  }
  func.func @transform_7(%arg0: i32) -> (i32, i32, i32) {
    %c0_i32 = arith.constant 0 : i32
    %c0_i32_0 = arith.constant 0 : i32
    %c0_i32_1 = arith.constant 0 : i32
    %c0_i32_2 = arith.constant 0 : i32
    return %c0_i32, %c0_i32_0, %c0_i32_1 : i32, i32, i32
  }
  func.func @transform_8(%arg0: i32) -> (i32, i32) {
    %c0_i32 = arith.constant 0 : i32
    %c0_i32_0 = arith.constant 0 : i32
    %c0_i32_1 = arith.constant 0 : i32
    return %c0_i32, %c0_i32_0 : i32, i32
  }
  func.func @transform_9(%arg0: i32) -> (i32, i32) {
    %c0_i32 = arith.constant 0 : i32
    %c0_i32_0 = arith.constant 0 : i32
    %c0_i32_1 = arith.constant 0 : i32
    return %c0_i32, %c0_i32_0 : i32, i32
  }
  func.func @transform_10(%arg0: i32) -> (i32, i32) {
    %c0_i32 = arith.constant 0 : i32
    %c0_i32_0 = arith.constant 0 : i32
    %c0_i32_1 = arith.constant 0 : i32
    return %c0_i32, %c0_i32_0 : i32, i32
  }
  func.func @transform_11(%arg0: i32) -> (i32, i32) {
    %c0_i32 = arith.constant 0 : i32
    %c0_i32_0 = arith.constant 0 : i32
    %c0_i32_1 = arith.constant 0 : i32
    return %c0_i32, %c0_i32_0 : i32, i32
  }
  func.func @transform_12(%arg0: i32) -> (i32, i32, i32) {
    %c0_i32 = arith.constant 0 : i32
    %c0_i32_0 = arith.constant 0 : i32
    %c0_i32_1 = arith.constant 0 : i32
    return %arg0, %c0_i32, %c0_i32_0 : i32, i32, i32
  }
}

</mosaic_0001>

<llo_original>
// kernel: tpu_custom_call.1
$region0: #{tpu_custom_call.1}
  #allocation0 [shape = 'u32[]', space=smem, size = 0x4, offset = 0x4, fixed_abs, tag = 'smem constant byte address 0x4 - core index']
  #allocation1 [shape = 'u32[72,128]{1,0:T(1,128)}', space=vmem, size = 0x9000, scoped, tag = 'internal scratch']
  %s0 = inlined_call_operand.vmem [shape: f32[2,8,64], index: 0, kind: input, shape index: {}]
  %s1 = inlined_call_operand.hbm [shape: f32[2,1,8], index: 1, kind: input, shape index: {}]
  %s2 = inlined_call_operand.vmem [shape: bf16[64,128], index: 2, kind: input, shape index: {}]
  %s3 = inlined_call_operand.vmem [shape: f32[1,128], index: 3, kind: input, shape index: {}]
  %s4 = inlined_call_operand.vmem [shape: f32[1,128], index: 4, kind: input, shape index: {}]
  %s5 = inlined_call_operand.hbm [shape: bf16[3,8,8], index: 5, kind: input, shape index: {}]
  %s6 = inlined_call_operand.vmem [shape: f32[3,8,128], index: 6, kind: input, shape index: {}]
  %s7 = inlined_call_operand.vmem [shape: f32[3,8,128], index: 7, kind: input, shape index: {}]
  %s8 = inlined_call_operand.vmem [shape: bf16[128,64], index: 8, kind: input, shape index: {}]
  %s9 = inlined_call_operand.vmem [shape: f32[1,64], index: 9, kind: input, shape index: {}]
  %s10 = inlined_call_operand.vmem [shape: f32[1,64], index: 10, kind: input, shape index: {}]
  %s11 = inlined_call_operand.vmem [shape: f32[1,64], index: 11, kind: input, shape index: {}]
  %s12 = inlined_call_operand.hbm [shape: f32[2,8,64], index: 12, kind: output, shape index: {}]
  %s13 = sld [smem:[#allocation0]]
  $region89: #{tpu_custom_call.1} parent=0
    _
  %s15 = ssub.s32 1, %s13
  %s16 = scalar_select 0, %s15, %s13
  $region1: #{tpu_custom_call.1} parent=0
    #allocation2 [shape = 'u8[1024]{0}', space=vmem, size = 0x400, scoped, tag = 'input window, operand 1']
    #allocation3 [shape = 's32[2]{0}', space=sflag, size = 0x8, scoped, tag = 'scoped memory for tpu_custom_call.1']
    #allocation4 [shape = 's32[2]{0}', space=sflag, size = 0x8, scoped, tag = 'scoped memory for tpu_custom_call.1']
    #allocation5 [shape = 'u8[6144]{0}', space=vmem, size = 0x1800, scoped, tag = 'input window, operand 5, single buffered']
    #allocation6 [shape = 's32[1]{0}', space=sflag, size = 0x4, scoped, tag = 'scoped memory for tpu_custom_call.1']
    #allocation7 [shape = 'u8[8192]{0}', space=vmem, size = 0x2000, scoped, tag = 'output window, operand 0']
    %17 = vsyncpa [#allocation3], 0
    %s18 = scalar_lea.sflag [#allocation3], 1
    %19 = vsyncpa %s18, 0
    %20 = vsyncpa [#allocation6], 0
    %21 = vsyncpa [#allocation4], 0
    %s22 = scalar_lea.sflag [#allocation4], 1
    %23 = vsyncpa %s22, 0
    loop: start=0, step=1, limit=4
    $region2: #{tpu_custom_call.1} parent=1 // loop_pre_header
      _
    $region3: #{tpu_custom_call.1} parent=1 // loop_header
      %s25 = sphi 0, %s29
      %p26 = scmp.ge.s32.totalorder %s25, 4
      %s35 = sphi 0, %s37
      %s38 = sphi 0, %s35
      %s39 = sphi 0, %s38
      %s55 = sphi 0, %s39
      %s61 = sphi 0, %s63
      %s64 = sphi 0, %s61
      %s65 = sphi 0, %s64
      %s81 = sphi 0, %s65
      %s85 = sphi 0, %s85
      %s87 = sphi 0, %s85
      %s88 = sphi 0, %s87
      %s102 = sphi 0, %s88
      %s106 = sphi 0, %s106
      %s108 = sphi 0, %s106
      %s109 = sphi 0, %s108
      %s123 = sphi 0, %s109
      %s127 = sphi 0, %s127
      %s129 = sphi 0, %s127
      %s130 = sphi 0, %s129
      %s144 = sphi 0, %s130
      %s148 = sphi 0, %s148
      %s150 = sphi 0, %s148
      %s151 = sphi 0, %s150
      %s165 = sphi 0, %s151
      %s169 = sphi 0, %s169
      %s171 = sphi 0, %s169
      %s172 = sphi 0, %s171
      %s186 = sphi 0, %s172
      %s190 = sphi 0, %s190
      %s192 = sphi 0, %s190
      %s193 = sphi 0, %s192
      %s207 = sphi 0, %s193
      %s211 = sphi 0, %s211
      %s213 = sphi 0, %s211
      %s214 = sphi 0, %s213
      %s228 = sphi 0, %s214
      %s232 = sphi 0, %s232
      %s234 = sphi 0, %s232
      %s235 = sphi 0, %s234
      %s249 = sphi 0, %s235
      %s253 = sphi 0, %s253
      %s255 = sphi 0, %s253
      %s256 = sphi 0, %s255
      %s270 = sphi 0, %s256
      %s274 = sphi 0, %s274
      %s276 = sphi 0, %s274
      %s277 = sphi 0, %s276
      %s291 = sphi 0, %s277
      %s297 = sphi 0, %s299
      %s300 = sphi 0, %s297
      %s301 = sphi 0, %s300
      %s317 = sphi 0, %s301
    $region4: #{tpu_custom_call.1} parent=1 // loop_header_branch
      %28 = sbr.rel (%p26) target = $region8
    $region5: #{tpu_custom_call.1} parent=1 // loop_body
      %s30 = ssub.s32 %s25, 1
      %s31 = ssub.s32 %s25, 2
      %s32 = sadd.s32 %s25, 1
      %s33 = ssub.s32 %s25, %s32
      %p34 = scmp.eq.s32.totalorder %s33, 0
      %s36 = sadd.s32 %s35, 1
      %s37 = scalar_select %p34, %s35, %s36
      %p40 = pneg %p34
      %p41 = scmp.eq.s32.totalorder %s25, 1
      %p42 = por %p40, %p41
      %p43 = scmp.ne.s32.totalorder %s35, %s38
      %p44 = scmp.eq.s32.totalorder %s25, 0
      %p45 = por %p43, %p44
      %p46 = scmp.ne.s32.totalorder %s35, %s38
      %p47 = scmp.eq.s32.totalorder %s30, 1
      %p48 = por %p46, %p47
      %p49 = scmp.ne.s32.totalorder %s38, %s39
      %p50 = scmp.eq.s32.totalorder %s30, 0
      %p51 = por %p49, %p50
      %p52 = scmp.ne.s32.totalorder %s38, %s39
      %p53 = scmp.eq.s32.totalorder %s31, 1
      %p54 = por %p52, %p53
      %p56 = scmp.ne.s32.totalorder %s39, %s55
      %p57 = scmp.eq.s32.totalorder %s31, 0
      %p58 = por %p56, %p57
      %s59 = ssub.s32 %s25, %s32
      %p60 = scmp.eq.s32.totalorder %s59, 0
      %s62 = sadd.s32 %s61, 1
      %s63 = scalar_select %p60, %s61, %s62
      %p66 = pneg %p60
      %p67 = scmp.eq.s32.totalorder %s25, 1
      %p68 = por %p66, %p67
      %p69 = scmp.ne.s32.totalorder %s61, %s64
      %p70 = scmp.eq.s32.totalorder %s25, 0
      %p71 = por %p69, %p70
      %p72 = scmp.ne.s32.totalorder %s61, %s64
      %p73 = scmp.eq.s32.totalorder %s30, 1
      %p74 = por %p72, %p73
      %p75 = scmp.ne.s32.totalorder %s64, %s65
      %p76 = scmp.eq.s32.totalorder %s30, 0
      %p77 = por %p75, %p76
      %p78 = scmp.ne.s32.totalorder %s64, %s65
      %p79 = scmp.eq.s32.totalorder %s31, 1
      %p80 = por %p78, %p79
      %p82 = scmp.ne.s32.totalorder %s65, %s81
      %p83 = scmp.eq.s32.totalorder %s31, 0
      %p84 = por %p82, %p83
      %s86 = sadd.s32 %s85, 1
      %p89 = scmp.eq.s32.totalorder %s25, 1
      %p90 = scmp.ne.s32.totalorder %s85, %s87
      %p91 = scmp.eq.s32.totalorder %s25, 0
      %p92 = por %p90, %p91
      %p93 = scmp.ne.s32.totalorder %s85, %s87
      %p94 = scmp.eq.s32.totalorder %s30, 1
      %p95 = por %p93, %p94
      %p96 = scmp.ne.s32.totalorder %s87, %s88
      %p97 = scmp.eq.s32.totalorder %s30, 0
      %p98 = por %p96, %p97
      %p99 = scmp.ne.s32.totalorder %s87, %s88
      %p100 = scmp.eq.s32.totalorder %s31, 1
      %p101 = por %p99, %p100
      %p103 = scmp.ne.s32.totalorder %s88, %s102
      %p104 = scmp.eq.s32.totalorder %s31, 0
      %p105 = por %p103, %p104
      %s107 = sadd.s32 %s106, 1
      %p110 = scmp.eq.s32.totalorder %s25, 1
      %p111 = scmp.ne.s32.totalorder %s106, %s108
      %p112 = scmp.eq.s32.totalorder %s25, 0
      %p113 = por %p111, %p112
      %p114 = scmp.ne.s32.totalorder %s106, %s108
      %p115 = scmp.eq.s32.totalorder %s30, 1
      %p116 = por %p114, %p115
      %p117 = scmp.ne.s32.totalorder %s108, %s109
      %p118 = scmp.eq.s32.totalorder %s30, 0
      %p119 = por %p117, %p118
      %p120 = scmp.ne.s32.totalorder %s108, %s109
      %p121 = scmp.eq.s32.totalorder %s31, 1
      %p122 = por %p120, %p121
      %p124 = scmp.ne.s32.totalorder %s109, %s123
      %p125 = scmp.eq.s32.totalorder %s31, 0
      %p126 = por %p124, %p125
      %s128 = sadd.s32 %s127, 1
      %p131 = scmp.eq.s32.totalorder %s25, 1
      %p132 = scmp.ne.s32.totalorder %s127, %s129
      %p133 = scmp.eq.s32.totalorder %s25, 0
      %p134 = por %p132, %p133
      %p135 = scmp.ne.s32.totalorder %s127, %s129
      %p136 = scmp.eq.s32.totalorder %s30, 1
      %p137 = por %p135, %p136
      %p138 = scmp.ne.s32.totalorder %s129, %s130
      %p139 = scmp.eq.s32.totalorder %s30, 0
      %p140 = por %p138, %p139
      %p141 = scmp.ne.s32.totalorder %s129, %s130
      %p142 = scmp.eq.s32.totalorder %s31, 1
      %p143 = por %p141, %p142
      %p145 = scmp.ne.s32.totalorder %s130, %s144
      %p146 = scmp.eq.s32.totalorder %s31, 0
      %p147 = por %p145, %p146
      %s149 = sadd.s32 %s148, 1
      %p152 = scmp.eq.s32.totalorder %s25, 1
      %p153 = scmp.ne.s32.totalorder %s148, %s150
      %p154 = scmp.eq.s32.totalorder %s25, 0
      %p155 = por %p153, %p154
      %p156 = scmp.ne.s32.totalorder %s148, %s150
      %p157 = scmp.eq.s32.totalorder %s30, 1
      %p158 = por %p156, %p157
      %p159 = scmp.ne.s32.totalorder %s150, %s151
      %p160 = scmp.eq.s32.totalorder %s30, 0
      %p161 = por %p159, %p160
      %p162 = scmp.ne.s32.totalorder %s150, %s151
      %p163 = scmp.eq.s32.totalorder %s31, 1
      %p164 = por %p162, %p163
      %p166 = scmp.ne.s32.totalorder %s151, %s165
      %p167 = scmp.eq.s32.totalorder %s31, 0
      %p168 = por %p166, %p167
      %s170 = sadd.s32 %s169, 1
      %p173 = scmp.eq.s32.totalorder %s25, 1
      %p174 = scmp.ne.s32.totalorder %s169, %s171
      %p175 = scmp.eq.s32.totalorder %s25, 0
      %p176 = por %p174, %p175
      %p177 = scmp.ne.s32.totalorder %s169, %s171
      %p178 = scmp.eq.s32.totalorder %s30, 1
      %p179 = por %p177, %p178
      %p180 = scmp.ne.s32.totalorder %s171, %s172
      %p181 = scmp.eq.s32.totalorder %s30, 0
      %p182 = por %p180, %p181
      %p183 = scmp.ne.s32.totalorder %s171, %s172
      %p184 = scmp.eq.s32.totalorder %s31, 1
      %p185 = por %p183, %p184
      %p187 = scmp.ne.s32.totalorder %s172, %s186
      %p188 = scmp.eq.s32.totalorder %s31, 0
      %p189 = por %p187, %p188
      %s191 = sadd.s32 %s190, 1
      %p194 = scmp.eq.s32.totalorder %s25, 1
      %p195 = scmp.ne.s32.totalorder %s190, %s192
      %p196 = scmp.eq.s32.totalorder %s25, 0
      %p197 = por %p195, %p196
      %p198 = scmp.ne.s32.totalorder %s190, %s192
      %p199 = scmp.eq.s32.totalorder %s30, 1
      %p200 = por %p198, %p199
      %p201 = scmp.ne.s32.totalorder %s192, %s193
      %p202 = scmp.eq.s32.totalorder %s30, 0
      %p203 = por %p201, %p202
      %p204 = scmp.ne.s32.totalorder %s192, %s193
      %p205 = scmp.eq.s32.totalorder %s31, 1
      %p206 = por %p204, %p205
      %p208 = scmp.ne.s32.totalorder %s193, %s207
      %p209 = scmp.eq.s32.totalorder %s31, 0
      %p210 = por %p208, %p209
      %s212 = sadd.s32 %s211, 1
      %p215 = scmp.eq.s32.totalorder %s25, 1
      %p216 = scmp.ne.s32.totalorder %s211, %s213
      %p217 = scmp.eq.s32.totalorder %s25, 0
      %p218 = por %p216, %p217
      %p219 = scmp.ne.s32.totalorder %s211, %s213
      %p220 = scmp.eq.s32.totalorder %s30, 1
      %p221 = por %p219, %p220
      %p222 = scmp.ne.s32.totalorder %s213, %s214
      %p223 = scmp.eq.s32.totalorder %s30, 0
      %p224 = por %p222, %p223
      %p225 = scmp.ne.s32.totalorder %s213, %s214
      %p226 = scmp.eq.s32.totalorder %s31, 1
      %p227 = por %p225, %p226
      %p229 = scmp.ne.s32.totalorder %s214, %s228
      %p230 = scmp.eq.s32.totalorder %s31, 0
      %p231 = por %p229, %p230
      %s233 = sadd.s32 %s232, 1
      %p236 = scmp.eq.s32.totalorder %s25, 1
      %p237 = scmp.ne.s32.totalorder %s232, %s234
      %p238 = scmp.eq.s32.totalorder %s25, 0
      %p239 = por %p237, %p238
      %p240 = scmp.ne.s32.totalorder %s232, %s234
      %p241 = scmp.eq.s32.totalorder %s30, 1
      %p242 = por %p240, %p241
      %p243 = scmp.ne.s32.totalorder %s234, %s235
      %p244 = scmp.eq.s32.totalorder %s30, 0
      %p245 = por %p243, %p244
      %p246 = scmp.ne.s32.totalorder %s234, %s235
      %p247 = scmp.eq.s32.totalorder %s31, 1
      %p248 = por %p246, %p247
      %p250 = scmp.ne.s32.totalorder %s235, %s249
      %p251 = scmp.eq.s32.totalorder %s31, 0
      %p252 = por %p250, %p251
      %s254 = sadd.s32 %s253, 1
      %p257 = scmp.eq.s32.totalorder %s25, 1
      %p258 = scmp.ne.s32.totalorder %s253, %s255
      %p259 = scmp.eq.s32.totalorder %s25, 0
      %p260 = por %p258, %p259
      %p261 = scmp.ne.s32.totalorder %s253, %s255
      %p262 = scmp.eq.s32.totalorder %s30, 1
      %p263 = por %p261, %p262
      %p264 = scmp.ne.s32.totalorder %s255, %s256
      %p265 = scmp.eq.s32.totalorder %s30, 0
      %p266 = por %p264, %p265
      %p267 = scmp.ne.s32.totalorder %s255, %s256
      %p268 = scmp.eq.s32.totalorder %s31, 1
      %p269 = por %p267, %p268
      %p271 = scmp.ne.s32.totalorder %s256, %s270
      %p272 = scmp.eq.s32.totalorder %s31, 0
      %p273 = por %p271, %p272
      %s275 = sadd.s32 %s274, 1
      %p278 = scmp.eq.s32.totalorder %s25, 1
      %p279 = scmp.ne.s32.totalorder %s274, %s276
      %p280 = scmp.eq.s32.totalorder %s25, 0
      %p281 = por %p279, %p280
      %p282 = scmp.ne.s32.totalorder %s274, %s276
      %p283 = scmp.eq.s32.totalorder %s30, 1
      %p284 = por %p282, %p283
      %p285 = scmp.ne.s32.totalorder %s276, %s277
      %p286 = scmp.eq.s32.totalorder %s30, 0
      %p287 = por %p285, %p286
      %p288 = scmp.ne.s32.totalorder %s276, %s277
      %p289 = scmp.eq.s32.totalorder %s31, 1
      %p290 = por %p288, %p289
      %p292 = scmp.ne.s32.totalorder %s277, %s291
      %p293 = scmp.eq.s32.totalorder %s31, 0
      %p294 = por %p292, %p293
      %s295 = ssub.s32 %s25, %s32
      %p296 = scmp.eq.s32.totalorder %s295, 0
      %s298 = sadd.s32 %s297, 1
      %s299 = scalar_select %p296, %s297, %s298
      %p302 = pneg %p296
      %p303 = scmp.eq.s32.totalorder %s25, 1
      %p304 = por %p302, %p303
      %p305 = scmp.ne.s32.totalorder %s297, %s300
      %p306 = scmp.eq.s32.totalorder %s25, 0
      %p307 = por %p305, %p306
      %p308 = scmp.ne.s32.totalorder %s297, %s300
      %p309 = scmp.eq.s32.totalorder %s30, 1
      %p310 = por %p308, %p309
      %p311 = scmp.ne.s32.totalorder %s300, %s301
      %p312 = scmp.eq.s32.totalorder %s30, 0
      %p313 = por %p311, %p312
      %p314 = scmp.ne.s32.totalorder %s300, %s301
      %p315 = scmp.eq.s32.totalorder %s31, 1
      %p316 = por %p314, %p315
      %p318 = scmp.ne.s32.totalorder %s301, %s317
      %p319 = scmp.eq.s32.totalorder %s31, 0
      %p320 = por %p318, %p319
      %p321 = scmp.le.s32.totalorder 1, %s25
      %p322 = scmp.lt.s32.totalorder %s25, 3
      %p323 = pnand %p321, %p322
      %p324 = pneg %p323
      // Predicated region
      $region9: #{tpu_custom_call.1} parent=5 // pred_check
        _
      $region10: #{tpu_custom_call.1} parent=5 // pred_check_branch
        %326 = sbr.rel (%p323) target = $region12
      $region11: #{tpu_custom_call.1} parent=5 // pred_region
        %s327 = ssub.s32 %s25, 1
        // Predicated region
        $region13: #{tpu_custom_call.1} parent=11 // pred_check
          %p328 = pneg %p98
        $region14: #{tpu_custom_call.1} parent=11 // pred_check_branch
          %330 = sbr.rel (%p328) target = $region16
        $region15: #{tpu_custom_call.1} parent=11 // pred_region
          _
        $region16: #{tpu_custom_call.1} parent=11 // pred_fallthru
          _
        // Predicated region
        $region17: #{tpu_custom_call.1} parent=11 // pred_check
          %p331 = pneg %p119
        $region18: #{tpu_custom_call.1} parent=11 // pred_check_branch
          %333 = sbr.rel (%p331) target = $region20
        $region19: #{tpu_custom_call.1} parent=11 // pred_region
          _
        $region20: #{tpu_custom_call.1} parent=11 // pred_fallthru
          _
        // Predicated region
        $region21: #{tpu_custom_call.1} parent=11 // pred_check
          %p334 = pneg %p140
        $region22: #{tpu_custom_call.1} parent=11 // pred_check_branch
          %336 = sbr.rel (%p334) target = $region24
        $region23: #{tpu_custom_call.1} parent=11 // pred_region
          _
        $region24: #{tpu_custom_call.1} parent=11 // pred_fallthru
          _
        // Predicated region
        $region25: #{tpu_custom_call.1} parent=11 // pred_check
          %p337 = pneg %p161
        $region26: #{tpu_custom_call.1} parent=11 // pred_check_branch
          %339 = sbr.rel (%p337) target = $region28
        $region27: #{tpu_custom_call.1} parent=11 // pred_region
          %341 = vsyncadd [#allocation6], 0
          %s342 = sshll.u32 %s5, 4
          %s343 = int_to_ptr.hbm [resolvable:$true] %s342
          %s344 = sshll.u32 [#allocation5], 4
          %s345 = int_to_ptr.vmem [resolvable:$true] %s344
          %350 = dma.hbm_to_vmem [thread:$0]  %s343, 192, %s345, [#allocation6], 64, 64, 4
        $region28: #{tpu_custom_call.1} parent=11 // pred_fallthru
          _
        // Predicated region
        $region29: #{tpu_custom_call.1} parent=11 // pred_check
          %p351 = pneg %p182
        $region30: #{tpu_custom_call.1} parent=11 // pred_check_branch
          %353 = sbr.rel (%p351) target = $region32
        $region31: #{tpu_custom_call.1} parent=11 // pred_region
          _
        $region32: #{tpu_custom_call.1} parent=11 // pred_fallthru
          _
        // Predicated region
        $region33: #{tpu_custom_call.1} parent=11 // pred_check
          %p354 = pneg %p203
        $region34: #{tpu_custom_call.1} parent=11 // pred_check_branch
          %356 = sbr.rel (%p354) target = $region36
        $region35: #{tpu_custom_call.1} parent=11 // pred_region
          _
        $region36: #{tpu_custom_call.1} parent=11 // pred_fallthru
          _
        // Predicated region
        $region37: #{tpu_custom_call.1} parent=11 // pred_check
          %p357 = pneg %p224
        $region38: #{tpu_custom_call.1} parent=11 // pred_check_branch
          %359 = sbr.rel (%p357) target = $region40
        $region39: #{tpu_custom_call.1} parent=11 // pred_region
          _
        $region40: #{tpu_custom_call.1} parent=11 // pred_fallthru
          _
        // Predicated region
        $region41: #{tpu_custom_call.1} parent=11 // pred_check
          %p360 = pneg %p245
        $region42: #{tpu_custom_call.1} parent=11 // pred_check_branch
          %362 = sbr.rel (%p360) target = $region44
        $region43: #{tpu_custom_call.1} parent=11 // pred_region
          _
        $region44: #{tpu_custom_call.1} parent=11 // pred_fallthru
          _
        // Predicated region
        $region45: #{tpu_custom_call.1} parent=11 // pred_check
          %p363 = pneg %p266
        $region46: #{tpu_custom_call.1} parent=11 // pred_check_branch
          %365 = sbr.rel (%p363) target = $region48
        $region47: #{tpu_custom_call.1} parent=11 // pred_region
          _
        $region48: #{tpu_custom_call.1} parent=11 // pred_fallthru
          _
        // Predicated region
        $region49: #{tpu_custom_call.1} parent=11 // pred_check
          %p366 = pneg %p287
        $region50: #{tpu_custom_call.1} parent=11 // pred_check_branch
          %368 = sbr.rel (%p366) target = $region52
        $region51: #{tpu_custom_call.1} parent=11 // pred_region
          _
        $region52: #{tpu_custom_call.1} parent=11 // pred_fallthru
          _
      $region12: #{tpu_custom_call.1} parent=5 // pred_fallthru
        _
      %p369 = scmp.lt.s32.totalorder %s25, 2
      // Predicated region
      $region53: #{tpu_custom_call.1} parent=5 // pred_check
        %p370 = pneg %p369
      $region54: #{tpu_custom_call.1} parent=5 // pred_check_branch
        %372 = sbr.rel (%p370) target = $region56
      $region55: #{tpu_custom_call.1} parent=5 // pred_region
        // Predicated region
        $region57: #{tpu_custom_call.1} parent=55 // pred_check
          %p373 = pneg %p45
        $region58: #{tpu_custom_call.1} parent=55 // pred_check_branch
          %375 = sbr.rel (%p373) target = $region60
        $region59: #{tpu_custom_call.1} parent=55 // pred_region
          %p376 = scmp.lt.s32.totalorder %s25, 1
          %s377 = scalar_select %p376, %s25, 1
          %s378 = smul.addr %s377, 8
          %s379 = scalar_lea.vmem %s0, %s378
        $region60: #{tpu_custom_call.1} parent=55 // pred_fallthru
          _
        // Predicated region
        $region61: #{tpu_custom_call.1} parent=55 // pred_check
          %p380 = pneg %p71
        $region62: #{tpu_custom_call.1} parent=55 // pred_check_branch
          %382 = sbr.rel (%p380) target = $region64
        $region63: #{tpu_custom_call.1} parent=55 // pred_region
          %s383 = sand.u32 %s61, 1
          %s384 = scalar_lea.sflag [#allocation3], %s383
          %s385 = sand.u32 %s61, 1
          %s386 = scalar_lea.vmem [#allocation2], %s385
          %388 = vsyncadd %s384, 0
          %s389 = scalar_lea.hbm %s1, %s25
          %s391 = sshll.u32 %s389, 4
          %s392 = int_to_ptr.hbm [resolvable:$true] %s391
          %s393 = sshll.u32 %s386, 4
          %s394 = int_to_ptr.vmem [resolvable:$true] %s393
          %396 = dma.hbm_to_vmem [thread:$0]  %s392, 16, %s394, %s384
        $region64: #{tpu_custom_call.1} parent=55 // pred_fallthru
          _
      $region56: #{tpu_custom_call.1} parent=5 // pred_fallthru
        _
      %p397 = scmp.le.s32.totalorder 1, %s25
      %p398 = scmp.lt.s32.totalorder %s25, 3
      %p399 = pnand %p397, %p398
      %p400 = pneg %p399
      // Predicated region
      $region65: #{tpu_custom_call.1} parent=5 // pred_check
        _
      $region66: #{tpu_custom_call.1} parent=5 // pred_check_branch
        %402 = sbr.rel (%p399) target = $region68
      $region67: #{tpu_custom_call.1} parent=5 // pred_region
        %s403 = ssub.s32 %s25, 1
        %s404 = sand.u32 %s64, 1
        %s405 = scalar_lea.sflag [#allocation3], %s404
        %s406 = sand.u32 %s64, 1
        %s407 = scalar_lea.vmem [#allocation2], %s406
        // Predicated region
        $region69: #{tpu_custom_call.1} parent=67 // pred_check
          %p408 = pneg %p77
        $region70: #{tpu_custom_call.1} parent=67 // pred_check_branch
          %410 = sbr.rel (%p408) target = $region72
        $region71: #{tpu_custom_call.1} parent=67 // pred_region
          %412 = dma.done %s405, 16
        $region72: #{tpu_custom_call.1} parent=67 // pred_fallthru
          _
        // Predicated region
        $region73: #{tpu_custom_call.1} parent=67 // pred_check
          %p413 = pneg %p161
        $region74: #{tpu_custom_call.1} parent=67 // pred_check_branch
          %415 = sbr.rel (%p413) target = $region76
        $region75: #{tpu_custom_call.1} parent=67 // pred_region
          %417 = dma.done [#allocation6], 192
        $region76: #{tpu_custom_call.1} parent=67 // pred_fallthru
          _
        %p418 = scmp.lt.s32.totalorder %s30, 1
        %s419 = scalar_select %p418, %s30, 1
        %s420 = smul.addr %s419, 8
        %s421 = scalar_lea.vmem %s0, %s420
        %p422 = pneg %p51
        %p423 = pneg %p48
        %s424 = sand.u32 %s64, 1
        %s425 = scalar_lea.sflag [#allocation3], %s424
        %s426 = sand.u32 %s64, 1
        %s427 = scalar_lea.vmem [#allocation2], %s426
        %p428 = pneg %p77
        %p429 = pneg %p74
        %p430 = pneg %p98
        %p431 = pneg %p95
        %p432 = pneg %p119
        %p433 = pneg %p116
        %p434 = pneg %p140
        %p435 = pneg %p137
        %p436 = pneg %p161
        %p437 = pneg %p158
        %p438 = pneg %p182
        %p439 = pneg %p179
        %p440 = pneg %p203
        %p441 = pneg %p200
        %p442 = pneg %p224
        %p443 = pneg %p221
        %p444 = pneg %p245
        %p445 = pneg %p242
        %p446 = pneg %p266
        %p447 = pneg %p263
        %p448 = pneg %p287
        %p449 = pneg %p284
        %p450 = pneg %p313
        %p451 = pneg %p310
        %s452 = sand.u32 %s300, 1
        %s453 = scalar_lea.sflag [#allocation4], %s452
        %s454 = sand.u32 %s300, 1
        %s455 = smul.addr %s454, 8
        %s456 = scalar_lea.vmem [#allocation7], %s455
        %p457 = scmp.lt.s32.totalorder %s30, 1
        %s458 = scalar_select %p457, %s30, 1
        %s459 = smul.addr %s458, 8
        %s460 = scalar_lea.vmem %s0, %s459
        %v462 = vld [vmem:[%s460] sm:$0xff]
        %v463 = vld [vmem:[%s407] sm:$0x1]
        %v464 = vpack.c.bf16 %v463, %v463
        %v465 = vpack.c.bf16 %v462, %v462
        %v466 = vld [vmem:[%s2] sm:$0xf]
        %v467 = vld [vmem:[%s2 + $0x4] sm:$0xf]
        %v468 = vld [vmem:[%s2 + $0x8] sm:$0xf]
        %v469 = vld [vmem:[%s2 + $0xc] sm:$0xf]
        %v470 = vld [vmem:[%s2 + $0x10] sm:$0xf]
        %v471 = vld [vmem:[%s2 + $0x14] sm:$0xf]
        %v472 = vld [vmem:[%s2 + $0x18] sm:$0xf]
        %v473 = vld [vmem:[%s2 + $0x1c] sm:$0xf]
        %v474 = vld [vmem:[%s3] sm:$0x1]
        %v476 = vperm.slane %v474, 0
        %v486 = vunpack.c.l.b16 %v466
        %v487 = vunpack.c.l.b16 %v467
        %v488 = vunpack.c.l.b16 %v468
        %v489 = vunpack.c.l.b16 %v469
        %v490 = vunpack.c.l.b16 %v470
        %v491 = vunpack.c.l.b16 %v471
        %v492 = vunpack.c.l.b16 %v472
        %v493 = vunpack.c.l.b16 %v473
        %v494 = vpack.c.b16 %v487, %v486
        %v495 = vpack.c.b16 %v489, %v488
        %v496 = vpack.c.b16 %v491, %v490
        %v497 = vpack.c.b16 %v493, %v492
        %vm502 = vcmask 523264
        %v504 = vsel %vm502, %v465, 0
        %506 = vmatpush.bf16.msra.mxu0 0
        %507 = vmatpush.bf16.msra.mxu0 0
        %508 = vmatpush.bf16.msra.mxu0 0
        %509 = vmatpush.bf16.msra.mxu0 0
        %510 = vmatpush.bf16.msra.mxu0 %v497
        %511 = vmatpush.bf16.msra.mxu0 %v496
        %512 = vmatpush.bf16.msra.mxu0 %v495
        %513 = vmatpush.bf16.msra.mxu0 %v494
        %514 = vmatmul.bf16.gmra.mxu0 %v504
        %v515 = vpop.f32.mrf.mxu0
        %v516 = vadd.f32 %v476, %v515
        %v517 = vpop.f32.mrf.mxu0
        %518 = vdwg.mxu0
        %v519 = vld [vmem:[%s4] sm:$0x1]
        %v521 = vperm.slane %v519, 0
        %v523 = vmul.f32 %v516, %v521
        %v524 = vld [vmem:[#allocation5] sm:$0xf]
        %v526 = vpack.i.b16 %v464, %v464
        %v528 = vperm.slane %v526, 0
        %v529 = vunpack.c.l.bf16 %v524
        %v530 = vunpack.c.l.bf16 %v528
        %v531 = vmul.f32 %v529, %v530
        %v532 = vpack.c.bf16 %v531, %v531
        %v533 = vld [vmem:[%s6] sm:$0xff]
        %v534 = vld [vmem:[%s7] sm:$0xff]
        %v535 = vpack.c.bf16 %v523, %v523
        %vm536 = vcmask 64512
        %v538 = vsel %vm536, %v532, 0
        %vm540 = vcmask 1043456
        %v542 = vsel %vm540, %v535, 0
        %544 = vmatpush.bf16.msra.mxu0 0
        %545 = vmatpush.bf16.msra.mxu0 0
        %546 = vmatpush.bf16.msra.mxu0 0
        %547 = vmatpush.bf16.msra.mxu0 0
        %548 = vmatpush.bf16.msra.mxu0 0
        %549 = vmatpush.bf16.msra.mxu0 0
        %550 = vmatpush.bf16.msra.mxu0 0
        %551 = vmatpush.bf16.msra.mxu0 %v542
        %552 = vmatmul.bf16.gmra.mxu0 %v538
        %v553 = vpop.f32.mrf.mxu0
        %v554 = vadd.f32 0.0, %v553
        %v555 = vpop.f32.mrf.mxu0
        %556 = vdwg.mxu0
        %v557 = vmul.f32 %v533, %v554
        %v558 = vadd.f32 %v523, %v557
        %v559 = vmul.f32 %v534, %v554
        %s560 = scalar_lea.vmem [#allocation5], 4
        %v561 = vld [vmem:[%s560] sm:$0xf]
        %v562 = vunpack.c.l.bf16 %v561
        %v563 = vmul.f32 %v562, %v530
        %v564 = vpack.c.bf16 %v563, %v563
        %s565 = scalar_lea.vmem %s6, 8
        %v566 = vld [vmem:[%s565] sm:$0xff]
        %s567 = scalar_lea.vmem %s7, 8
        %v568 = vld [vmem:[%s567] sm:$0xff]
        %v569 = vpack.c.bf16 %v558, %v558
        %v571 = vsel %vm536, %v564, 0
        %v574 = vsel %vm540, %v569, 0
        %576 = vmatpush.bf16.msra.mxu0 0
        %577 = vmatpush.bf16.msra.mxu0 0
        %578 = vmatpush.bf16.msra.mxu0 0
        %579 = vmatpush.bf16.msra.mxu0 0
        %580 = vmatpush.bf16.msra.mxu0 0
        %581 = vmatpush.bf16.msra.mxu0 0
        %582 = vmatpush.bf16.msra.mxu0 0
        %583 = vmatpush.bf16.msra.mxu0 %v574
        %584 = vmatmul.bf16.gmra.mxu0 %v571
        %v585 = vpop.f32.mrf.mxu0
        %v586 = vadd.f32 0.0, %v585
        %v587 = vpop.f32.mrf.mxu0
        %588 = vdwg.mxu0
        %v589 = vpack.c.bf16 %v559, %v559
        %v591 = vsel %vm540, %v589, 0
        %593 = vmatpush.bf16.msra.mxu0 0
        %594 = vmatpush.bf16.msra.mxu0 0
        %595 = vmatpush.bf16.msra.mxu0 0
        %596 = vmatpush.bf16.msra.mxu0 0
        %597 = vmatpush.bf16.msra.mxu0 0
        %598 = vmatpush.bf16.msra.mxu0 0
        %599 = vmatpush.bf16.msra.mxu0 0
        %600 = vmatpush.bf16.msra.mxu0 %v591
        %601 = vmatmul.bf16.gmra.mxu0 %v571
        %v602 = vpop.f32.mrf.mxu0
        %v603 = vadd.f32 0.0, %v602
        %v604 = vpop.f32.mrf.mxu0
        %605 = vdwg.mxu0
        %v606 = vmul.f32 %v566, %v586
        %v607 = vadd.f32 %v558, %v606
        %v608 = vmul.f32 %v568, %v603
        %v609 = vsub.f32 %v607, %v608
        %v610 = vmul.f32 %v566, %v603
        %v611 = vadd.f32 %v559, %v610
        %v612 = vmul.f32 %v568, %v586
        %v613 = vadd.f32 %v611, %v612
        %s614 = scalar_lea.vmem [#allocation5], 8
        %v615 = vld [vmem:[%s614] sm:$0xf]
        %v616 = vunpack.c.l.bf16 %v615
        %v617 = vmul.f32 %v616, %v530
        %v618 = vpack.c.bf16 %v617, %v617
        %s619 = scalar_lea.vmem %s6, 16
        %v620 = vld [vmem:[%s619] sm:$0xff]
        %s621 = scalar_lea.vmem %s7, 16
        %v622 = vld [vmem:[%s621] sm:$0xff]
        %v623 = vpack.c.bf16 %v609, %v609
        %v625 = vsel %vm536, %v618, 0
        %v628 = vsel %vm540, %v623, 0
        %630 = vmatpush.bf16.msra.mxu0 0
        %631 = vmatpush.bf16.msra.mxu0 0
        %632 = vmatpush.bf16.msra.mxu0 0
        %633 = vmatpush.bf16.msra.mxu0 0
        %634 = vmatpush.bf16.msra.mxu0 0
        %635 = vmatpush.bf16.msra.mxu0 0
        %636 = vmatpush.bf16.msra.mxu0 0
        %637 = vmatpush.bf16.msra.mxu0 %v628
        %638 = vmatmul.bf16.gmra.mxu0 %v625
        %v639 = vpop.f32.mrf.mxu0
        %v640 = vadd.f32 0.0, %v639
        %v641 = vpop.f32.mrf.mxu0
        %642 = vdwg.mxu0
        %v643 = vpack.c.bf16 %v613, %v613
        %v645 = vsel %vm540, %v643, 0
        %647 = vmatpush.bf16.msra.mxu0 0
        %648 = vmatpush.bf16.msra.mxu0 0
        %649 = vmatpush.bf16.msra.mxu0 0
        %650 = vmatpush.bf16.msra.mxu0 0
        %651 = vmatpush.bf16.msra.mxu0 0
        %652 = vmatpush.bf16.msra.mxu0 0
        %653 = vmatpush.bf16.msra.mxu0 0
        %654 = vmatpush.bf16.msra.mxu0 %v645
        %655 = vmatmul.bf16.gmra.mxu0 %v625
        %v656 = vpop.f32.mrf.mxu0
        %v657 = vadd.f32 0.0, %v656
        %v658 = vpop.f32.mrf.mxu0
        %659 = vdwg.mxu0
        %v660 = vmul.f32 %v620, %v640
        %v661 = vadd.f32 %v609, %v660
        %v662 = vmul.f32 %v622, %v657
        %v663 = vsub.f32 %v661, %v662
        %v664 = vpack.c.bf16 %v663, %v663
        %v665 = vld [vmem:[%s8] sm:$0xf]
        %v666 = vld [vmem:[%s8 + $0x4] sm:$0xf]
        %v667 = vld [vmem:[%s8 + $0x8] sm:$0xf]
        %v668 = vld [vmem:[%s8 + $0xc] sm:$0xf]
        %v669 = vld [vmem:[%s8 + $0x10] sm:$0xf]
        %v670 = vld [vmem:[%s8 + $0x14] sm:$0xf]
        %v671 = vld [vmem:[%s8 + $0x18] sm:$0xf]
        %v672 = vld [vmem:[%s8 + $0x1c] sm:$0xf]
        %v673 = vld [vmem:[%s8 + $0x20] sm:$0xf]
        %v674 = vld [vmem:[%s8 + $0x24] sm:$0xf]
        %v675 = vld [vmem:[%s8 + $0x28] sm:$0xf]
        %v676 = vld [vmem:[%s8 + $0x2c] sm:$0xf]
        %v677 = vld [vmem:[%s8 + $0x30] sm:$0xf]
        %v678 = vld [vmem:[%s8 + $0x34] sm:$0xf]
        %v679 = vld [vmem:[%s8 + $0x38] sm:$0xf]
        %v680 = vld [vmem:[%s8 + $0x3c] sm:$0xf]
        %v681 = vld [vmem:[%s9] sm:$0x1]
        %v683 = vperm.slane %v681, 0
        %v701 = vunpack.c.l.b16 %v665
        %v702 = vunpack.c.l.b16 %v666
        %v703 = vunpack.c.l.b16 %v667
        %v704 = vunpack.c.l.b16 %v668
        %v705 = vunpack.c.l.b16 %v669
        %v706 = vunpack.c.l.b16 %v670
        %v707 = vunpack.c.l.b16 %v671
        %v708 = vunpack.c.l.b16 %v672
        %v709 = vunpack.c.l.b16 %v673
        %v710 = vunpack.c.l.b16 %v674
        %v711 = vunpack.c.l.b16 %v675
        %v712 = vunpack.c.l.b16 %v676
        %v713 = vunpack.c.l.b16 %v677
        %v714 = vunpack.c.l.b16 %v678
        %v715 = vunpack.c.l.b16 %v679
        %v716 = vunpack.c.l.b16 %v680
        %v717 = vpack.c.b16 %v702, %v701
        %v718 = vpack.c.b16 %v704, %v703
        %v719 = vpack.c.b16 %v706, %v705
        %v720 = vpack.c.b16 %v708, %v707
        %v721 = vpack.c.b16 %v710, %v709
        %v722 = vpack.c.b16 %v712, %v711
        %v723 = vpack.c.b16 %v714, %v713
        %v724 = vpack.c.b16 %v716, %v715
        %733 = vmatpush.bf16.msra.mxu0 %v724
        %734 = vmatpush.bf16.msra.mxu0 %v723
        %735 = vmatpush.bf16.msra.mxu0 %v722
        %736 = vmatpush.bf16.msra.mxu0 %v721
        %737 = vmatpush.bf16.msra.mxu0 %v720
        %738 = vmatpush.bf16.msra.mxu0 %v719
        %739 = vmatpush.bf16.msra.mxu0 %v718
        %740 = vmatpush.bf16.msra.mxu0 %v717
        %741 = vmatmul.bf16.gmra.mxu0 %v664
        %v742 = vpop.f32.mrf.mxu0
        %v743 = vadd.f32 %v683, %v742
        %v744 = vpop.f32.mrf.mxu0
        %745 = vdwg.mxu0
        %v746 = vadd.f32 %v743, %v462
        %v747 = vsel %vm502, %v746, 0.0
        %748 = vadd.xlane.f32.xlu0 %v747
        %v749 = vpop.xlane.xlu0 %748
        %v750 = vrcp.pop 64.0
        %v751 = vmul.f32 64.0, %v750
        %v752 = vsub.f32 1.0, %v751
        %v753 = vmul.f32 %v750, %v752
        %v754 = vadd.f32 %v750, %v753
        %vm755 = vweird.f32 %v750
        %v756 = vsel %vm755, %v750, %v754
        %v757 = vmul.f32 %v749, %v756
        %v758 = vsub.f32 %v746, %v757
        %v759 = vmul.f32 %v758, %v758
        %v760 = vsel %vm502, %v759, 0.0
        %761 = vadd.xlane.f32.xlu0 %v760
        %v762 = vpop.xlane.xlu0 %761
        %v763 = vmul.f32 %v762, %v756
        %v764 = vadd.f32 %v763, 1e-05
        %v765 = vrsqrt.pop %v764
        %v766 = vmul.f32 %v765, %v764
        %v767 = vmul.f32 %v766, %v765
        %v768 = vmul.f32 0.5, %v767
        %v769 = vsub.f32 1.5, %v768
        %v770 = vmul.f32 %v765, %v769
        %vm771 = vweird.f32 %v764
        %vm772 = vweird.f32 %v765
        %vm773 = vmor %vm771, %vm772
        %v774 = vsel %vm773, %v765, %v770
        %v775 = vmul.f32 %v758, %v774
        %v776 = vld [vmem:[%s10] sm:$0x1]
        %v778 = vperm.slane %v776, 0
        %v780 = vmul.f32 %v775, %v778
        %v781 = vld [vmem:[%s11] sm:$0x1]
        %v783 = vperm.slane %v781, 0
        %v785 = vadd.f32 %v780, %v783
        %786 = vst.msk [vmem:[%s456] sm:$0xff] %vm502, %v785
        %s787 = sand.u32 %s300, 1
        %s788 = scalar_lea.sflag [#allocation4], %s787
        %s789 = sand.u32 %s300, 1
        %s790 = smul.addr %s789, 8
        %s791 = scalar_lea.vmem [#allocation7], %s790
        // Predicated region
        $region77: #{tpu_custom_call.1} parent=67 // pred_check
          %p792 = pneg %p310
        $region78: #{tpu_custom_call.1} parent=67 // pred_check_branch
          %794 = sbr.rel (%p792) target = $region80
        $region79: #{tpu_custom_call.1} parent=67 // pred_region
          %796 = vsyncadd %s788, 0
          %s797 = smul.addr %s30, 8
          %s798 = scalar_lea.hbm %s12, %s797
          %s800 = sshll.u32 %s791, 4
          %s801 = int_to_ptr.vmem [resolvable:$true] %s800
          %s802 = sshll.u32 %s798, 4
          %s803 = int_to_ptr.hbm [resolvable:$true] %s802
          %805 = dma.vmem_to_hbm [thread:$0]  %s801, 128, %s803, %s788
        $region80: #{tpu_custom_call.1} parent=67 // pred_fallthru
          _
      $region68: #{tpu_custom_call.1} parent=5 // pred_fallthru
        _
      %p806 = scmp.le.s32.totalorder 2, %s25
      // Predicated region
      $region81: #{tpu_custom_call.1} parent=5 // pred_check
        %p807 = pneg %p806
      $region82: #{tpu_custom_call.1} parent=5 // pred_check_branch
        %809 = sbr.rel (%p807) target = $region84
      $region83: #{tpu_custom_call.1} parent=5 // pred_region
        %s810 = ssub.s32 %s25, 2
        // Predicated region
        $region85: #{tpu_custom_call.1} parent=83 // pred_check
          %p811 = pneg %p316
        $region86: #{tpu_custom_call.1} parent=83 // pred_check_branch
          %813 = sbr.rel (%p811) target = $region88
        $region87: #{tpu_custom_call.1} parent=83 // pred_region
          %s814 = sand.u32 %s301, 1
          %s815 = scalar_lea.sflag [#allocation4], %s814
          %s816 = sand.u32 %s301, 1
          %s817 = smul.addr %s816, 8
          %s818 = scalar_lea.vmem [#allocation7], %s817
          %820 = dma.done %s815, 128
        $region88: #{tpu_custom_call.1} parent=83 // pred_fallthru
          _
      $region84: #{tpu_custom_call.1} parent=5 // pred_fallthru
        _
    $region6: #{tpu_custom_call.1} parent=1 // loop_footer
      %s29 = sadd.s32 1, %s25
    $region7: #{tpu_custom_call.1} parent=1 // loop_footer_branch
      %24 = sbr.rel target = $region3
    $region8: #{tpu_custom_call.1} parent=1 // loop_exit
      _
    %821 = vsyncpa [#allocation3], 1
    %s822 = scalar_lea.sflag [#allocation3], 1
    %823 = vsyncpa %s822, 1
    %824 = vsyncpa [#allocation6], 1
    %825 = vsyncpa [#allocation4], 1
    %s826 = scalar_lea.sflag [#allocation4], 1
    %827 = vsyncpa %s826, 1

</llo_original>
